<compile_context>
chip_gen: v7x
topology: tpu7x:2x2x1
jax: 0.10.0
libtpu: 0.0.40
codegen_flags: <defaults>
</compile_context>

<pallas_src>
import jax
import jax.numpy as jnp
from jax import lax
from jax.experimental import pallas as pl
from jax.experimental.pallas import tpu as pltpu

T = 20.0


def _choose_block_rows(n_rows, n_cols, itemsize):
    """Pick a batch-tile size: ~2 MiB per input block, multiple of 8, capped at 1024."""
    target = max(8, (2 * 1024 * 1024) // max(n_cols * itemsize, 1))
    block_rows = min(1024, (target // 8) * 8)
    block_rows = max(block_rows, 8)
    if block_rows >= n_rows:
        return n_rows                      # single full block: always layout-legal
    return block_rows                      # multiple of 8: satisfies (8, 128) tiling rule


def kl_divergence_loss(x, y, *, block_rows=None):
    """x: teacher logits (N, C), y: student logits (N, C). Returns scalar f32 loss."""
    assert x.shape == y.shape and x.ndim == 2
    n_total, n_cls = x.shape
    itemsize = jnp.dtype(x.dtype).itemsize

    if block_rows is None:
        block_rows = _choose_block_rows(n_total, n_cls, itemsize)
    if block_rows >= n_total:
        block_rows = n_total
    else:
        block_rows = max(8, (block_rows // 8) * 8)

    grid = (pl.cdiv(n_total, block_rows),)
    scale = float(T * T) / float(n_total)          # normalize by the TOTAL batch size
    inv_t = 1.0 / float(T)

    def kernel(x_ref, y_ref, out_ref, acc_ref):
        i = pl.program_id(0)

        @pl.when(i == 0)
        def _init():
            acc_ref[...] = jnp.zeros_like(acc_ref)

        xs = x_ref[...].astype(jnp.float32) * jnp.float32(inv_t)
        ys = y_ref[...].astype(jnp.float32) * jnp.float32(inv_t)

        # Teacher log-softmax pieces:  p = x_sh - x_lse
        x_max = jnp.max(xs, axis=1, keepdims=True)
        x_sh = xs - x_max
        x_lse = jnp.log(jnp.sum(jnp.exp(x_sh), axis=1, keepdims=True))

        # Student softmax pieces:      q = y_exp / y_sum,  log q = y_sh - log(y_sum)
        y_max = jnp.max(ys, axis=1, keepdims=True)
        y_sh = ys - y_max
        y_exp = jnp.exp(y_sh)
        y_sum = jnp.sum(y_exp, axis=1, keepdims=True)

        # Per-row KL = sum_j q_j * (log q_j - p_j)
        #            = (1/y_sum) * sum_j y_exp_j * (y_sh_j - x_sh_j) - log(y_sum) + x_lse
        # (uses sum_j q_j == 1; removes q / log_q / xlogy / where full-tile temporaries)
        num = jnp.sum(y_exp * (y_sh - x_sh), axis=1, keepdims=True)
        row_kl = num * pl.reciprocal(y_sum, approx=False) - jnp.log(y_sum) + x_lse

        # Mask padded remainder rows of the last tile so they contribute zero.
        tn = xs.shape[0]
        row_ids = i * tn + lax.broadcasted_iota(jnp.int32, (tn, 1), 0)
        row_kl = jnp.where(row_ids < n_total, row_kl, 0.0)

        acc_ref[...] += row_kl

        @pl.when(i == pl.num_programs(0) - 1)
        def _finalize():
            out_ref[0] = jnp.sum(acc_ref[...]) * jnp.float32(scale)

    out = pl.pallas_call(
        kernel,
        out_shape=jax.ShapeDtypeStruct((1,), jnp.float32),
        grid_spec=pltpu.PrefetchScalarGridSpec(
            num_scalar_prefetch=0,
            grid=grid,
            in_specs=[
                pl.BlockSpec((block_rows, n_cls), lambda i: (i, 0)),
                pl.BlockSpec((block_rows, n_cls), lambda i: (i, 0)),
            ],
            out_specs=pl.BlockSpec(memory_space=pltpu.MemorySpace.SMEM),
            scratch_shapes=[pltpu.VMEM((block_rows, 1), jnp.float32)],
        ),
        compiler_params=pltpu.CompilerParams(
            dimension_semantics=("arbitrary",),          # resident accumulator across tiles
            vmem_limit_bytes=48 * 1024 * 1024,           # > v5e/v6e defaults, < v7x physical
        ),
    )(x, y)
    return out[0]


def _reference_loss(x, y):
    p_ref = jax.nn.log_softmax(x / T, axis=1)
    q_ref = jax.nn.softmax(y / T, axis=1)
    return jnp.sum(q_ref * (jnp.log(q_ref) - p_ref)) * T**2 / x.shape[0]


if __name__ == "__main__":
    key = jax.random.PRNGKey(0)
    kx, ky = jax.random.split(key)
    # Small but lane-dense shapes (C = 128 fills all vector lanes); N = 12 with an explicit
    # block_rows=8 exercises the tiled grid + remainder-row masking path.
    N, C = 12, 128
    x = jax.random.normal(kx, (N, C), dtype=jnp.float32) * 10.0
    y = jax.random.normal(ky, (N, C), dtype=jnp.float32) * 10.0

    ref = _reference_loss(x, y)

    # Tiled path (2 grid steps, last tile padded/masked).
    loss_tiled = jax.block_until_ready(kl_divergence_loss(x, y, block_rows=8))
    # Default path (auto tile size -> single full block here).
    loss_auto = jax.block_until_ready(kl_divergence_loss(x, y))

    # f32-honest tolerance: the algebraic rearrangement cancels two ~log(C)-sized terms.
    assert jnp.allclose(loss_tiled, ref, rtol=2e-4, atol=1e-5), (loss_tiled, ref)
    assert jnp.allclose(loss_auto, ref, rtol=2e-4, atol=1e-5), (loss_auto, ref)

    print("KERNEL_OK")
</pallas_src>

<mosaic_0001>
module attributes {stable_mosaic.version = 11 : i64} {
  func.func @kernel(%arg0: i32, %arg1: memref<8x128xf32, #tpu.memory_space<vmem>>, %arg2: memref<8x128xf32, #tpu.memory_space<vmem>>, %arg3: memref<1xf32, #tpu.memory_space<smem>>, %arg4: memref<8x1xf32, #tpu.memory_space<vmem>>) attributes {dimension_semantics = [#tpu.dimension_semantics<arbitrary>], iteration_bounds = array<i64: 2>, scalar_prefetch = 0 : i64, scratch_operands = 1 : i64, tpu.core_type = #tpu.core_type<tc>, window_params = [{transform_indices = @transform_0, window_bounds = array<i64: 8, 128>}, {transform_indices = @transform_1, window_bounds = array<i64: 8, 128>}, {transform_indices = @transform_2, window_bounds = array<i64: 1>}]} {
    %c0_i32 = arith.constant 0 : i32
    %0 = arith.cmpi eq, %arg0, %c0_i32 : i32
    %1 = arith.extui %0 : i1 to i32
    %c0_i32_0 = arith.constant 0 : i32
    %2 = arith.cmpi ne, %1, %c0_i32_0 : i32
    scf.if %2 {
      %cst_16 = arith.constant 0.000000e+00 : f32
      %47 = vector.broadcast %cst_16 : f32 to vector<8x1xf32>
      %c0_17 = arith.constant 0 : index
      %c0_18 = arith.constant 0 : index
      %48 = vector.load %arg4[%c0_17, %c0_18] : memref<8x1xf32, #tpu.memory_space<vmem>>, vector<8x1xf32>
      tpu.vector_store %arg4[%c0_17, %c0_18], %47 {strides = array<i32>} : memref<8x1xf32, #tpu.memory_space<vmem>>, vector<8x1xf32>,
    } else {
    }
    %c0 = arith.constant 0 : index
    %c0_1 = arith.constant 0 : index
    %3 = vector.load %arg1[%c0, %c0_1] : memref<8x128xf32, #tpu.memory_space<vmem>>, vector<8x128xf32>
    %cst = arith.constant 5.000000e-02 : f32
    %4 = vector.broadcast %cst : f32 to vector<8x128xf32>
    %5 = arith.mulf %3, %4 : vector<8x128xf32>
    %c0_2 = arith.constant 0 : index
    %c0_3 = arith.constant 0 : index
    %6 = vector.load %arg2[%c0_2, %c0_3] : memref<8x128xf32, #tpu.memory_space<vmem>>, vector<8x128xf32>
    %cst_4 = arith.constant 5.000000e-02 : f32
    %7 = vector.broadcast %cst_4 : f32 to vector<8x128xf32>
    %8 = arith.mulf %6, %7 : vector<8x128xf32>
    %cst_5 = arith.constant dense<0xFF800000> : vector<8xf32>
    %9 = vector.multi_reduction <maximumf>, %5, %cst_5 [1] : vector<8x128xf32> to vector<8xf32>
    %10 = vector.shape_cast %9 : vector<8xf32> to vector<8x1xf32>
    %11 = vector.broadcast %10 : vector<8x1xf32> to vector<8x128xf32>
    %12 = arith.subf %5, %11 : vector<8x128xf32>
    %13 = math.exp %12 : vector<8x128xf32>
    %cst_6 = arith.constant dense<0.000000e+00> : vector<8xf32>
    %14 = vector.multi_reduction <add>, %13, %cst_6 [1] : vector<8x128xf32> to vector<8xf32>
    %15 = vector.shape_cast %14 : vector<8xf32> to vector<8x1xf32>
    %16 = math.log %15 : vector<8x1xf32>
    %cst_7 = arith.constant dense<0xFF800000> : vector<8xf32>
    %17 = vector.multi_reduction <maximumf>, %8, %cst_7 [1] : vector<8x128xf32> to vector<8xf32>
    %18 = vector.shape_cast %17 : vector<8xf32> to vector<8x1xf32>
    %19 = vector.broadcast %18 : vector<8x1xf32> to vector<8x128xf32>
    %20 = arith.subf %8, %19 : vector<8x128xf32>
    %21 = math.exp %20 : vector<8x128xf32>
    %cst_8 = arith.constant dense<0.000000e+00> : vector<8xf32>
    %22 = vector.multi_reduction <add>, %21, %cst_8 [1] : vector<8x128xf32> to vector<8xf32>
    %23 = vector.shape_cast %22 : vector<8xf32> to vector<8x1xf32>
    %24 = arith.subf %20, %12 : vector<8x128xf32>
    %25 = arith.mulf %21, %24 : vector<8x128xf32>
    %cst_9 = arith.constant dense<0.000000e+00> : vector<8xf32>
    %26 = vector.multi_reduction <add>, %25, %cst_9 [1] : vector<8x128xf32> to vector<8xf32>
    %27 = vector.shape_cast %26 : vector<8xf32> to vector<8x1xf32>
    %28 = tpu.reciprocal %23 : vector<8x1xf32> -> vector<8x1xf32>
    %29 = arith.mulf %27, %28 : vector<8x1xf32>
    %30 = math.log %23 : vector<8x1xf32>
    %31 = arith.subf %29, %30 : vector<8x1xf32>
    %32 = arith.addf %31, %16 : vector<8x1xf32>
    %c8_i32 = arith.constant 8 : i32
    %33 = arith.muli %arg0, %c8_i32 : i32
    %34 = tpu.iota {dimensions = array<i32: 0>} : vector<8x1xi32>
    %35 = vector.broadcast %33 : i32 to vector<8x1xi32>
    %36 = arith.addi %35, %34 : vector<8x1xi32>
    %c12_i32 = arith.constant 12 : i32
    %37 = vector.broadcast %c12_i32 : i32 to vector<8x1xi32>
    %38 = arith.cmpi slt, %36, %37 : vector<8x1xi32>
    %cst_10 = arith.constant 0.000000e+00 : f32
    %39 = vector.broadcast %cst_10 : f32 to vector<8x1xf32>
    %40 = arith.select %38, %32, %39 : vector<8x1xi1>, vector<8x1xf32>
    %c0_11 = arith.constant 0 : index
    %c0_12 = arith.constant 0 : index
    %41 = vector.load %arg4[%c0_11, %c0_12] : memref<8x1xf32, #tpu.memory_space<vmem>>, vector<8x1xf32>
    %42 = arith.addf %41, %40 : vector<8x1xf32>
    %c0_13 = arith.constant 0 : index
    %c0_14 = arith.constant 0 : index
    %43 = vector.load %arg4[%c0_13, %c0_14] : memref<8x1xf32, #tpu.memory_space<vmem>>, vector<8x1xf32>
    tpu.vector_store %arg4[%c0_13, %c0_14], %42 {strides = array<i32>} : memref<8x1xf32, #tpu.memory_space<vmem>>, vector<8x1xf32>,
    %c1_i32 = arith.constant 1 : i32
    %44 = arith.cmpi eq, %arg0, %c1_i32 : i32
    %45 = arith.extui %44 : i1 to i32
    %c0_i32_15 = arith.constant 0 : i32
    %46 = arith.cmpi ne, %45, %c0_i32_15 : i32
    scf.if %46 {
      %c0_16 = arith.constant 0 : index
      %c0_17 = arith.constant 0 : index
      %47 = vector.load %arg4[%c0_16, %c0_17] : memref<8x1xf32, #tpu.memory_space<vmem>>, vector<8x1xf32>
      %48 = vector.shape_cast %47 : vector<8x1xf32> to vector<1x8x1xf32>
      %cst_18 = arith.constant dense<0.000000e+00> : vector<1xf32>
      %49 = vector.multi_reduction <add>, %48, %cst_18 [1, 2] : vector<1x8x1xf32> to vector<1xf32>
      %50 = vector.shape_cast %49 : vector<1xf32> to vector<1x1x1xf32>
      %51 = vector.extract %50[0, 0, 0] : f32 from vector<1x1x1xf32>
      %cst_19 = arith.constant 33.3333321 : f32
      %52 = arith.mulf %51, %cst_19 : f32
      %c0_20 = arith.constant 0 : index
      %53 = memref.load %arg3[%c0_20] : memref<1xf32, #tpu.memory_space<smem>>
      memref.store %52, %arg3[%c0_20] : memref<1xf32, #tpu.memory_space<smem>>
    } else {
    }
    return
  }
  func.func @transform_0(%arg0: i32) -> (i32, i32) {
    %c0_i32 = arith.constant 0 : i32
    %c0_i32_0 = arith.constant 0 : i32
    return %arg0, %c0_i32 : i32, i32
  }
  func.func @transform_1(%arg0: i32) -> (i32, i32) {
    %c0_i32 = arith.constant 0 : i32
    %c0_i32_0 = arith.constant 0 : i32
    return %arg0, %c0_i32 : i32, i32
  }
  func.func @transform_2(%arg0: i32) -> i32 {
    %c0_i32 = arith.constant 0 : i32
    %c0_i32_0 = arith.constant 0 : i32
    return %c0_i32 : i32
  }
}

</mosaic_0001>

<llo_original>
// kernel: tpu_custom_call.1
$region0: #{tpu_custom_call.1}
  #allocation0 [shape = 'u32[]', space=smem, size = 0x4, offset = 0x4, fixed_abs, tag = 'smem constant byte address 0x4 - core index']
  #allocation1 [shape = 'u32[144,128]{1,0:T(1,128)}', space=vmem, size = 0x12000, scoped, tag = 'internal scratch']
  #allocation2 [shape = 'f32[8,1]{1,0:T(8,128)}', space=vmem, size = 0x1000, scoped, tag = 'scratch operand']
  %s0 = inlined_call_operand.hbm [shape: f32[12,128], index: 0, kind: input, shape index: {}]
  %s1 = inlined_call_operand.hbm [shape: f32[12,128], index: 1, kind: input, shape index: {}]
  %s2 = inlined_call_operand.hbm [shape: f32[1], index: 2, kind: output, shape index: {}]
  %s3 = sld [smem:[#allocation0]]
  $region57: #{tpu_custom_call.1} parent=0
    _
  %s5 = ssub.s32 1, %s3
  %s6 = scalar_select 0, %s5, %s3
  $region1: #{tpu_custom_call.1} parent=0
    #allocation3 [shape = 'u8[8192]{0}', space=vmem, size = 0x2000, scoped, tag = 'input window, operand 0']
    #allocation4 [shape = 's32[2]{0}', space=sflag, size = 0x8, scoped, tag = 'scoped memory for tpu_custom_call.1']
    #allocation5 [shape = 's32[2]{0}', space=sflag, size = 0x8, scoped, tag = 'scoped memory for tpu_custom_call.1']
    #allocation6 [shape = 'u8[8192]{0}', space=vmem, size = 0x2000, scoped, tag = 'input window, operand 1']
    #allocation7 [shape = 's32[2]{0}', space=sflag, size = 0x8, scoped, tag = 'scoped memory for tpu_custom_call.1']
    #allocation8 [shape = 'u8[512]{0}', space=smem, size = 0x200, scoped, tag = 'output window, operand 0, single buffered']
    %7 = vsyncpa [#allocation4], 0
    %s8 = scalar_lea.sflag [#allocation4], 1
    %9 = vsyncpa %s8, 0
    %10 = vsyncpa [#allocation7], 0
    %s11 = scalar_lea.sflag [#allocation7], 1
    %12 = vsyncpa %s11, 0
    %13 = vsyncpa [#allocation5], 0
    loop: start=0, step=1, limit=4
    $region2: #{tpu_custom_call.1} parent=1 // loop_pre_header
      _
    $region3: #{tpu_custom_call.1} parent=1 // loop_header
      %s15 = sphi 0, %s19
      %p16 = scmp.ge.s32.totalorder %s15, 4
      %s25 = sphi 0, %s27
      %s28 = sphi 0, %s25
      %s29 = sphi 0, %s28
      %s45 = sphi 0, %s29
      %s51 = sphi 0, %s53
      %s54 = sphi 0, %s51
      %s55 = sphi 0, %s54
      %s71 = sphi 0, %s55
      %s75 = sphi 0, %s75
      %s77 = sphi 0, %s75
      %s78 = sphi 0, %s77
      %s92 = sphi 0, %s78
    $region4: #{tpu_custom_call.1} parent=1 // loop_header_branch
      %18 = sbr.rel (%p16) target = $region8
    $region5: #{tpu_custom_call.1} parent=1 // loop_body
      %s20 = ssub.s32 %s15, 1
      %s21 = ssub.s32 %s15, 2
      %s22 = sadd.s32 %s15, 1
      %s23 = ssub.s32 %s15, %s22
      %p24 = scmp.eq.s32.totalorder %s23, 0
      %s26 = sadd.s32 %s25, 1
      %s27 = scalar_select %p24, %s25, %s26
      %p30 = pneg %p24
      %p31 = scmp.eq.s32.totalorder %s15, 1
      %p32 = por %p30, %p31
      %p33 = scmp.ne.s32.totalorder %s25, %s28
      %p34 = scmp.eq.s32.totalorder %s15, 0
      %p35 = por %p33, %p34
      %p36 = scmp.ne.s32.totalorder %s25, %s28
      %p37 = scmp.eq.s32.totalorder %s20, 1
      %p38 = por %p36, %p37
      %p39 = scmp.ne.s32.totalorder %s28, %s29
      %p40 = scmp.eq.s32.totalorder %s20, 0
      %p41 = por %p39, %p40
      %p42 = scmp.ne.s32.totalorder %s28, %s29
      %p43 = scmp.eq.s32.totalorder %s21, 1
      %p44 = por %p42, %p43
      %p46 = scmp.ne.s32.totalorder %s29, %s45
      %p47 = scmp.eq.s32.totalorder %s21, 0
      %p48 = por %p46, %p47
      %s49 = ssub.s32 %s15, %s22
      %p50 = scmp.eq.s32.totalorder %s49, 0
      %s52 = sadd.s32 %s51, 1
      %s53 = scalar_select %p50, %s51, %s52
      %p56 = pneg %p50
      %p57 = scmp.eq.s32.totalorder %s15, 1
      %p58 = por %p56, %p57
      %p59 = scmp.ne.s32.totalorder %s51, %s54
      %p60 = scmp.eq.s32.totalorder %s15, 0
      %p61 = por %p59, %p60
      %p62 = scmp.ne.s32.totalorder %s51, %s54
      %p63 = scmp.eq.s32.totalorder %s20, 1
      %p64 = por %p62, %p63
      %p65 = scmp.ne.s32.totalorder %s54, %s55
      %p66 = scmp.eq.s32.totalorder %s20, 0
      %p67 = por %p65, %p66
      %p68 = scmp.ne.s32.totalorder %s54, %s55
      %p69 = scmp.eq.s32.totalorder %s21, 1
      %p70 = por %p68, %p69
      %p72 = scmp.ne.s32.totalorder %s55, %s71
      %p73 = scmp.eq.s32.totalorder %s21, 0
      %p74 = por %p72, %p73
      %s76 = sadd.s32 %s75, 1
      %p79 = scmp.eq.s32.totalorder %s15, 1
      %p80 = scmp.ne.s32.totalorder %s75, %s77
      %p81 = scmp.eq.s32.totalorder %s15, 0
      %p82 = por %p80, %p81
      %p83 = scmp.ne.s32.totalorder %s75, %s77
      %p84 = scmp.eq.s32.totalorder %s20, 1
      %p85 = por %p83, %p84
      %p86 = scmp.ne.s32.totalorder %s77, %s78
      %p87 = scmp.eq.s32.totalorder %s20, 0
      %p88 = por %p86, %p87
      %p89 = scmp.ne.s32.totalorder %s77, %s78
      %p90 = scmp.eq.s32.totalorder %s21, 1
      %p91 = por %p89, %p90
      %p93 = scmp.ne.s32.totalorder %s78, %s92
      %p94 = scmp.eq.s32.totalorder %s21, 0
      %p95 = por %p93, %p94
      %p96 = scmp.le.s32.totalorder 1, %s15
      %p97 = scmp.lt.s32.totalorder %s15, 3
      %p98 = pnand %p96, %p97
      %p99 = pneg %p98
      // Predicated region
      $region9: #{tpu_custom_call.1} parent=5 // pred_check
        _
      $region10: #{tpu_custom_call.1} parent=5 // pred_check_branch
        %101 = sbr.rel (%p98) target = $region12
      $region11: #{tpu_custom_call.1} parent=5 // pred_region
        %s102 = ssub.s32 %s15, 1
      $region12: #{tpu_custom_call.1} parent=5 // pred_fallthru
        _
      %p103 = scmp.lt.s32.totalorder %s15, 2
      // Predicated region
      $region13: #{tpu_custom_call.1} parent=5 // pred_check
        %p104 = pneg %p103
      $region14: #{tpu_custom_call.1} parent=5 // pred_check_branch
        %106 = sbr.rel (%p104) target = $region16
      $region15: #{tpu_custom_call.1} parent=5 // pred_region
        // Predicated region
        $region17: #{tpu_custom_call.1} parent=15 // pred_check
          %p107 = pneg %p35
        $region18: #{tpu_custom_call.1} parent=15 // pred_check_branch
          %109 = sbr.rel (%p107) target = $region20
        $region19: #{tpu_custom_call.1} parent=15 // pred_region
          %s110 = sand.u32 %s25, 1
          %s111 = scalar_lea.sflag [#allocation4], %s110
          %s112 = sand.u32 %s25, 1
          %s113 = smul.addr %s112, 8
          %s114 = scalar_lea.vmem [#allocation3], %s113
          %s116 = ssub.s32 128, 128
          %117 = vsyncadd %s111, %s116
          %s118 = smul.addr %s15, 128
          %s119 = scalar_lea.hbm %s0, %s118
          %s121 = sshll.u32 %s114, 4
          %s122 = int_to_ptr.vmem [resolvable:$true] %s121
          %124 = dma.hbm_to_vmem [thread:$0]  %s119, 128, %s122, %s111
        $region20: #{tpu_custom_call.1} parent=15 // pred_fallthru
          _
        // Predicated region
        $region21: #{tpu_custom_call.1} parent=15 // pred_check
          %p125 = pneg %p61
        $region22: #{tpu_custom_call.1} parent=15 // pred_check_branch
          %127 = sbr.rel (%p125) target = $region24
        $region23: #{tpu_custom_call.1} parent=15 // pred_region
          %s128 = sand.u32 %s51, 1
          %s129 = scalar_lea.sflag [#allocation7], %s128
          %s130 = sand.u32 %s51, 1
          %s131 = smul.addr %s130, 8
          %s132 = scalar_lea.vmem [#allocation6], %s131
          %s134 = ssub.s32 128, 128
          %135 = vsyncadd %s129, %s134
          %s136 = smul.addr %s15, 128
          %s137 = scalar_lea.hbm %s1, %s136
          %s139 = sshll.u32 %s132, 4
          %s140 = int_to_ptr.vmem [resolvable:$true] %s139
          %142 = dma.hbm_to_vmem [thread:$0]  %s137, 128, %s140, %s129
        $region24: #{tpu_custom_call.1} parent=15 // pred_fallthru
          _
      $region16: #{tpu_custom_call.1} parent=5 // pred_fallthru
        _
      %p143 = scmp.le.s32.totalorder 1, %s15
      %p144 = scmp.lt.s32.totalorder %s15, 3
      %p145 = pnand %p143, %p144
      %p146 = pneg %p145
      // Predicated region
      $region25: #{tpu_custom_call.1} parent=5 // pred_check
        _
      $region26: #{tpu_custom_call.1} parent=5 // pred_check_branch
        %148 = sbr.rel (%p145) target = $region28
      $region27: #{tpu_custom_call.1} parent=5 // pred_region
        %s149 = ssub.s32 %s15, 1
        %s150 = sand.u32 %s28, 1
        %s151 = scalar_lea.sflag [#allocation4], %s150
        %s152 = sand.u32 %s28, 1
        %s153 = smul.addr %s152, 8
        %s154 = scalar_lea.vmem [#allocation3], %s153
        // Predicated region
        $region29: #{tpu_custom_call.1} parent=27 // pred_check
          %p155 = pneg %p41
        $region30: #{tpu_custom_call.1} parent=27 // pred_check_branch
          %157 = sbr.rel (%p155) target = $region32
        $region31: #{tpu_custom_call.1} parent=27 // pred_region
          %158 = dma.done %s151, 128
        $region32: #{tpu_custom_call.1} parent=27 // pred_fallthru
          _
        %s159 = sand.u32 %s54, 1
        %s160 = scalar_lea.sflag [#allocation7], %s159
        %s161 = sand.u32 %s54, 1
        %s162 = smul.addr %s161, 8
        %s163 = scalar_lea.vmem [#allocation6], %s162
        // Predicated region
        $region33: #{tpu_custom_call.1} parent=27 // pred_check
          %p164 = pneg %p67
        $region34: #{tpu_custom_call.1} parent=27 // pred_check_branch
          %166 = sbr.rel (%p164) target = $region36
        $region35: #{tpu_custom_call.1} parent=27 // pred_region
          %167 = dma.done %s160, 128
        $region36: #{tpu_custom_call.1} parent=27 // pred_fallthru
          _
        %s168 = sand.u32 %s28, 1
        %s169 = scalar_lea.sflag [#allocation4], %s168
        %s170 = sand.u32 %s28, 1
        %s171 = smul.addr %s170, 8
        %s172 = scalar_lea.vmem [#allocation3], %s171
        %p173 = pneg %p41
        %p174 = pneg %p38
        %s175 = sand.u32 %s54, 1
        %s176 = scalar_lea.sflag [#allocation7], %s175
        %s177 = sand.u32 %s54, 1
        %s178 = smul.addr %s177, 8
        %s179 = scalar_lea.vmem [#allocation6], %s178
        %p180 = pneg %p67
        %p181 = pneg %p64
        %p182 = pneg %p88
        %p183 = pneg %p85
        %p184 = scmp.eq.s32.totalorder %s20, 0
        // Predicated region
        $region37: #{tpu_custom_call.1} parent=27 // pred_check
          %p185 = pneg %p184
        $region38: #{tpu_custom_call.1} parent=27 // pred_check_branch
          %187 = sbr.rel (%p185) target = $region40
        $region39: #{tpu_custom_call.1} parent=27 // pred_region
          %vm188 = vcmask 7168
          %189 = vst.msk [vmem:[#allocation2] sm:$0xff] %vm188, 0.0
        $region40: #{tpu_custom_call.1} parent=27 // pred_fallthru
          _
        %v190 = vld [vmem:[%s154] sm:$0xff]
        %v191 = vmul.f32 %v190, 0.05
        %v192 = vld [vmem:[%s163] sm:$0xff]
        %v193 = vmul.f32 %v192, 0.05
        %194 = vmax.xlane.f32.xlu0 %v191
        %v195 = vpop.xlane.xlu0 %194
        %v196 = vsub.f32 %v191, %v195
        %v197 = vmul.f32 %v196, 1.442695
        %v198 = vpow.pop %v197
        %199 = vadd.xlane.f32.xlu0 %v198
        %v200 = vpop.xlane.xlu0 %199
        %v201 = vlog2.pop %v200
        %v202 = vmul.f32 %v201, 0.6931472
        %203 = vmax.xlane.f32.xlu0 %v193
        %v204 = vpop.xlane.xlu0 %203
        %v205 = vsub.f32 %v193, %v204
        %v206 = vmul.f32 %v205, 1.442695
        %v207 = vpow.pop %v206
        %208 = vadd.xlane.f32.xlu0 %v207
        %v209 = vpop.xlane.xlu0 %208
        %v210 = vsub.f32 %v205, %v196
        %v211 = vmul.f32 %v207, %v210
        %212 = vadd.xlane.f32.xlu0 %v211
        %v213 = vpop.xlane.xlu0 %212
        %v214 = vrcp.pop %v209
        %v215 = vmul.f32 %v213, %v214
        %v216 = vlog2.pop %v209
        %v217 = vmul.f32 %v216, 0.6931472
        %v218 = vsub.f32 %v215, %v217
        %v219 = vadd.f32 %v218, %v202
        %s220 = smul.u32 %s20, 8
        %v221 = vlaneseq
        %v222 = vshrl.u32 %v221, 7
        %v223 = vstv %s220
        %v224 = vadd.s32 %v223, %v222
        %vm225 = vcmp.lt.s32.totalorder %v224, 12
        %v226 = vsel %vm225, %v219, 0.0
        %v227 = vld [vmem:[#allocation2] sm:$0xff]
        %v228 = vadd.f32 %v227, %v226
        %vm229 = vcmask 7168
        %230 = vst.msk [vmem:[#allocation2] sm:$0xff] %vm229, %v228
        %p231 = scmp.eq.s32.totalorder %s20, 1
        // Predicated region
        $region41: #{tpu_custom_call.1} parent=27 // pred_check
          %p232 = pneg %p231
        $region42: #{tpu_custom_call.1} parent=27 // pred_check_branch
          %234 = sbr.rel (%p232) target = $region44
        $region43: #{tpu_custom_call.1} parent=27 // pred_region
          %v235 = vld [vmem:[#allocation2] sm:$0xff]
          %v236 = vsel %vm229, %v235, 0.0
          %237 = vadd.xlane.f32.xlu0 %v236
          %v238 = vpop.xlane.xlu0 %237
          %v239 = vrot.slane %v238, 4
          %v240 = vadd.f32 %v238, %v239
          %v241 = vrot.slane %v240, 2
          %v242 = vadd.f32 %v240, %v241
          %v243 = vrot.slane %v242, 1
          %v244 = vadd.f32 %v242, %v243
          %s245 = vtos %v244
          %s246 = smul.f32 %s245, 33.333332
          %s247 = scalar_lea.smem [#allocation8], 0
          %248 = sst [smem:[%s247]] %s246
        $region44: #{tpu_custom_call.1} parent=27 // pred_fallthru
          _
        // Predicated region
        $region45: #{tpu_custom_call.1} parent=27 // pred_check
          %p249 = pneg %p85
        $region46: #{tpu_custom_call.1} parent=27 // pred_check_branch
          %251 = sbr.rel (%p249) target = $region48
        $region47: #{tpu_custom_call.1} parent=27 // pred_region
          %s253 = ssub.s32 16, 16
          %254 = vsyncadd [#allocation5], %s253
          %257 = dma.smem_to_hbm [#allocation8], 16, %s2, [#allocation5]
        $region48: #{tpu_custom_call.1} parent=27 // pred_fallthru
          _
        // Predicated region
        $region49: #{tpu_custom_call.1} parent=27 // pred_check
          %p258 = pneg %p85
        $region50: #{tpu_custom_call.1} parent=27 // pred_check_branch
          %260 = sbr.rel (%p258) target = $region52
        $region51: #{tpu_custom_call.1} parent=27 // pred_region
          %261 = dma.done [#allocation5], 16
        $region52: #{tpu_custom_call.1} parent=27 // pred_fallthru
          _
        %262 = sfence
      $region28: #{tpu_custom_call.1} parent=5 // pred_fallthru
        _
      %p263 = scmp.le.s32.totalorder 2, %s15
      // Predicated region
      $region53: #{tpu_custom_call.1} parent=5 // pred_check
        %p264 = pneg %p263
      $region54: #{tpu_custom_call.1} parent=5 // pred_check_branch
        %266 = sbr.rel (%p264) target = $region56
      $region55: #{tpu_custom_call.1} parent=5 // pred_region
        %s267 = ssub.s32 %s15, 2
      $region56: #{tpu_custom_call.1} parent=5 // pred_fallthru
        _
    $region6: #{tpu_custom_call.1} parent=1 // loop_footer
      %s19 = sadd.s32 1, %s15
    $region7: #{tpu_custom_call.1} parent=1 // loop_footer_branch
      %14 = sbr.rel target = $region3
    $region8: #{tpu_custom_call.1} parent=1 // loop_exit
      _
    %268 = vsyncpa [#allocation4], 1
    %s269 = scalar_lea.sflag [#allocation4], 1
    %270 = vsyncpa %s269, 1
    %271 = vsyncpa [#allocation7], 1
    %s272 = scalar_lea.sflag [#allocation7], 1
    %273 = vsyncpa %s272, 1
    %274 = vsyncpa [#allocation5], 1
    %s275 = scalar_lea.sflag [#allocation5], 1
    %276 = vsyncpa %s275, 1

</llo_original>
